<compile_context>
chip_gen: v5e
topology: v5e:2x2
jax: 0.10.0
libtpu: 0.0.40
codegen_flags: <defaults>
</compile_context>

<pallas_src>
import math
import numpy as np
import jax
import jax.numpy as jnp
from jax.experimental import pallas as pl
from jax.experimental.pallas import tpu as pltpu

INPUT_SIZE = 2                       # dim of z / w (trajectory point)
COND_SIZE = 6                        # cond_label_size: dim of y / u
COND_DIM = INPUT_SIZE + COND_SIZE    # MLP input dim (= 8)
HIDDEN = 2 * COND_DIM                # per-net MLP hidden dim (= 16), per get_mlp
FUSED_HIDDEN = 2 * HIDDEN            # fused (shift || log_scale) hidden (= 32)
FUSED_OUT = 2 * COND_SIZE + 1        # fused output: [means | log_std | sum(log_std)] (= 13)
BIJ_OUT = 2 * INPUT_SIZE + 1         # bijection output: [s | t | sum(s)] (= 5)
OUT_W = 8                            # output slab width: [w (2) | log term (1) | pad (5)]
B = 64                               # demo batch
MAX_TB = 512                         # batch-tile cap (VMEM-safe on v7x)


def cif_step_kernel(zy_ref, eps_ref,
                    w1r_ref, b1r_ref, w1qw_ref, w1qy_ref, b1q_ref,
                    w2_ref, b2_ref, w3_ref, b3_ref,
                    bw_ref, bb_ref,
                    out_ref):
    zy = zy_ref[...]
    z = zy[:, :INPUT_SIZE]
    y = zy[:, INPUT_SIZE:]
    eps = eps_ref[...]
    # Depends only on the input -> scheduled early, off the MLP critical path.
    half_eps_sq = 0.5 * jnp.sum(eps * eps, axis=-1, keepdims=True)

    const = -0.5 * COND_SIZE * math.log(2.0 * math.pi)

    def mlp_tail(h, i):
        # Layers 2 and 3 of the fused (shift || log_scale) MLP for density i.
        h = jnp.maximum(h, 0.0)
        h = jnp.dot(h, w2_ref[i], preferred_element_type=jnp.float32) + b2_ref[i]
        h = jnp.maximum(h, 0.0)
        return jnp.dot(h, w3_ref[i], preferred_element_type=jnp.float32) + b3_ref[i]

    # --- u, log_r_u = r_u_given_z.sample(cat([z, y], -1)) ---
    h_r = jnp.dot(zy, w1r_ref[...], preferred_element_type=jnp.float32) + b1r_ref[...]
    out_r = mlp_tail(h_r, 0)                          # (TB, 13)
    means_r = out_r[:, :COND_SIZE]
    log_std_r = out_r[:, COND_SIZE:2 * COND_SIZE]
    sum_log_std_r = out_r[:, 2 * COND_SIZE:2 * COND_SIZE + 1]   # folded row-sum

    u = jnp.exp(log_std_r) * eps + means_r            # reparameterized sample
    # (u - means_r)^2 / std_r^2 == eps^2 by construction.
    log_r_u = const - sum_log_std_r - half_eps_sq

    # --- w, log_det_jac = bijection.forward(z, u)  (conditional affine) ---
    st = jnp.dot(u, bw_ref[...], preferred_element_type=jnp.float32) + bb_ref[...]
    s = st[:, :INPUT_SIZE]
    t = st[:, INPUT_SIZE:2 * INPUT_SIZE]
    log_det_jac = st[:, 2 * INPUT_SIZE:2 * INPUT_SIZE + 1]      # folded sum(s)
    w = z * jnp.exp(s) + t

    # --- log_q_u = q_u_given_w.log_prob(u, cat([w, y], -1)) ---
    h_q = (jnp.dot(w, w1qw_ref[...], preferred_element_type=jnp.float32)
           + jnp.dot(y, w1qy_ref[...], preferred_element_type=jnp.float32)
           + b1q_ref[...])
    out_q = mlp_tail(h_q, 1)                          # (TB, 13)
    means_q = out_q[:, :COND_SIZE]
    neg2_log_std_q = out_q[:, COND_SIZE:2 * COND_SIZE]          # pre-scaled by -2
    sum_log_std_q = out_q[:, 2 * COND_SIZE:2 * COND_SIZE + 1]   # unscaled sum

    d = u - means_q
    log_q_u = (const - sum_log_std_q
               - 0.5 * jnp.sum(d * d * jnp.exp(neg2_log_std_q),
                               axis=-1, keepdims=True))

    log_term = log_det_jac + log_q_u - log_r_u
    tb = w.shape[0]
    out_ref[...] = jnp.concatenate(
        [w, log_term, jnp.zeros((tb, OUT_W - INPUT_SIZE - 1), jnp.float32)],
        axis=-1)


def _choose_tb(b):
    if b <= MAX_TB:
        return b
    for tb in (512, 256, 128, 64, 32, 16, 8):
        if b % tb == 0:
            return tb
    return b  # fall back to one big block


def cif_step_forward(z, y, eps, packed):
    b = z.shape[0]
    tb = _choose_tb(b)
    grid = (b // tb,)
    zy = jnp.concatenate([z, y], axis=-1)             # free outside the kernel

    def const_spec(a):
        return pl.BlockSpec(a.shape, lambda i, n=a.ndim: (0,) * n)

    out = pl.pallas_call(
        cif_step_kernel,
        out_shape=jax.ShapeDtypeStruct((b, OUT_W), jnp.float32),
        grid=grid,
        in_specs=[pl.BlockSpec((tb, COND_DIM), lambda i: (i, 0)),
                  pl.BlockSpec((tb, COND_SIZE), lambda i: (i, 0))]
                 + [const_spec(a) for a in packed],
        out_specs=pl.BlockSpec((tb, OUT_W), lambda i: (i, 0)),
        compiler_params=pltpu.CompilerParams(
            dimension_semantics=("parallel",)),
    )(zy, eps, *packed)
    return out[:, :INPUT_SIZE], out[:, INPUT_SIZE]


cif_step_forward = jax.jit(cif_step_forward)


def make_params(key):
    """Deterministic synthetic weights in the original (unfused) layout.

    MLP index: 0 = r.shift, 1 = r.log_scale, 2 = q.shift, 3 = q.log_scale.
    """
    ks = jax.random.split(key, 8)
    scale = 0.2
    w1 = scale * jax.random.normal(ks[0], (4, COND_DIM, HIDDEN), jnp.float32)
    b1 = scale * jax.random.normal(ks[1], (4, 1, HIDDEN), jnp.float32)
    w2 = scale * jax.random.normal(ks[2], (4, HIDDEN, HIDDEN), jnp.float32)
    b2 = scale * jax.random.normal(ks[3], (4, 1, HIDDEN), jnp.float32)
    w3 = scale * jax.random.normal(ks[4], (4, HIDDEN, COND_SIZE), jnp.float32)
    b3 = scale * jax.random.normal(ks[5], (4, 1, COND_SIZE), jnp.float32)
    bw = scale * jax.random.normal(ks[6], (2, COND_SIZE, INPUT_SIZE), jnp.float32)
    bb = scale * jax.random.normal(ks[7], (2, 1, INPUT_SIZE), jnp.float32)
    return (w1, b1, w2, b2, w3, b3, bw, bb)


def pack_params(params):
    """Host-side prepack.

    Fused net 0 = r_u_given_z, fused net 1 = q_u_given_w.
    Layer 1: output-concat (r: single (8,32); q: pre-split w-rows / y-rows).
    Layer 2: block-diagonal.
    Layer 3: block-diagonal + extra column = column-sum of the log_std block
             (gives sum(log_std) straight from the matmul); the q log_std
             columns & bias are additionally pre-scaled by -2.
    Bijection: [s | t | sum(s)] projection in one (6, 5) matrix.
    """
    w1, b1, w2, b2, w3, b3, bw, bb = params

    def cat_out(x, a, c):
        return jnp.concatenate([x[a], x[c]], axis=-1)

    def block_diag(a, c):
        zpad = jnp.zeros_like(a)
        top = jnp.concatenate([a, zpad], axis=-1)
        bot = jnp.concatenate([zpad, c], axis=-1)
        return jnp.concatenate([top, bot], axis=0)

    # layer 1
    w1r = cat_out(w1, 0, 1)                      # (8, 32)
    b1r = cat_out(b1, 0, 1)                      # (1, 32)
    w1q = cat_out(w1, 2, 3)                      # (8, 32)
    w1qw = w1q[:INPUT_SIZE]                      # (2, 32)  w-rows
    w1qy = w1q[INPUT_SIZE:]                      # (6, 32)  y-rows
    b1q = cat_out(b1, 2, 3)                      # (1, 32)

    # layer 2
    w2f = jnp.stack([block_diag(w2[0], w2[1]),
                     block_diag(w2[2], w2[3])], axis=0)          # (2, 32, 32)
    b2f = jnp.stack([cat_out(b2, 0, 1), cat_out(b2, 2, 3)], 0)   # (2, 1, 32)

    # layer 3 (+ folded row-sum column, optional -2 scaling of log_std cols)
    zpad = jnp.zeros((HIDDEN, COND_SIZE), jnp.float32)
    zcol = jnp.zeros((HIDDEN, 1), jnp.float32)

    def l3(shift_i, ls_i, ls_scale):
        means_cols = jnp.concatenate([w3[shift_i], zpad], axis=0)             # (32, 6)
        ls_cols = jnp.concatenate([zpad, ls_scale * w3[ls_i]], axis=0)        # (32, 6)
        sum_col = jnp.concatenate(
            [zcol, jnp.sum(w3[ls_i], axis=-1, keepdims=True)], axis=0)        # (32, 1)
        wmat = jnp.concatenate([means_cols, ls_cols, sum_col], axis=-1)       # (32, 13)
        bvec = jnp.concatenate(
            [b3[shift_i], ls_scale * b3[ls_i],
             jnp.sum(b3[ls_i], axis=-1, keepdims=True)], axis=-1)             # (1, 13)
        return wmat, bvec

    w3r, b3r = l3(0, 1, 1.0)
    w3q, b3q = l3(2, 3, -2.0)
    w3f = jnp.stack([w3r, w3q], axis=0)          # (2, 32, 13)
    b3f = jnp.stack([b3r, b3q], axis=0)          # (2, 1, 13)

    # bijection: [s | t | sum(s)]
    bwf = jnp.concatenate([bw[0], bw[1],
                           jnp.sum(bw[0], axis=-1, keepdims=True)], axis=-1)  # (6, 5)
    bbf = jnp.concatenate([bb[0], bb[1],
                           jnp.sum(bb[0], axis=-1, keepdims=True)], axis=-1)  # (1, 5)
    return (w1r, b1r, w1qw, w1qy, b1q, w2f, b2f, w3f, b3f, bwf, bbf)


def ref_forward(z, y, eps, params):
    """Pure-JAX reference mirroring the PyTorch CIF_step.forward semantics."""
    w1, b1, w2, b2, w3, b3, bw, bb = params

    def mlp(x, i):
        h = jnp.maximum(x @ w1[i] + b1[i], 0.0)
        h = jnp.maximum(h @ w2[i] + b2[i], 0.0)
        return h @ w3[i] + b3[i]

    const = -0.5 * COND_SIZE * math.log(2.0 * math.pi)
    cond1 = jnp.concatenate([z, y], axis=-1)
    means_r, ls_r = mlp(cond1, 0), mlp(cond1, 1)
    u = jnp.exp(ls_r) * eps + means_r
    log_r = (const - ls_r.sum(-1)
             - 0.5 * (((u - means_r) ** 2) / jnp.exp(ls_r) ** 2).sum(-1))
    s = u @ bw[0] + bb[0]
    t = u @ bw[1] + bb[1]
    w = z * jnp.exp(s) + t
    ldj = s.sum(-1)
    cond2 = jnp.concatenate([w, y], axis=-1)
    means_q, ls_q = mlp(cond2, 2), mlp(cond2, 3)
    log_q = (const - ls_q.sum(-1)
             - 0.5 * (((u - means_q) ** 2) / jnp.exp(ls_q) ** 2).sum(-1))
    return w, ldj + log_q - log_r


if __name__ == "__main__":
    key = jax.random.PRNGKey(0)
    kz, ky, keps, kp = jax.random.split(key, 4)
    z = jax.random.normal(kz, (B, INPUT_SIZE), jnp.float32)
    y = jax.random.normal(ky, (B, COND_SIZE), jnp.float32)
    eps = jax.random.normal(keps, (B, COND_SIZE), jnp.float32)
    params = make_params(kp)
    packed = pack_params(params)

    w_k, log_k = cif_step_forward(z, y, eps, packed)
    jax.block_until_ready((w_k, log_k))

    w_r, log_r = ref_forward(z, y, eps, params)
    assert np.allclose(np.asarray(w_k), np.asarray(w_r), atol=1e-4, rtol=1e-4)
    assert np.allclose(np.asarray(log_k), np.asarray(log_r), atol=1e-4, rtol=1e-4)
    print("KERNEL_OK")
</pallas_src>

<mosaic_0001>
module attributes {stable_mosaic.version = 11 : i64} {
  func.func @cif_step_kernel(%arg0: i32, %arg1: memref<64x8xf32, #tpu.memory_space<vmem>>, %arg2: memref<64x6xf32, #tpu.memory_space<vmem>>, %arg3: memref<8x32xf32, #tpu.memory_space<vmem>>, %arg4: memref<1x32xf32, #tpu.memory_space<vmem>>, %arg5: memref<2x32xf32, #tpu.memory_space<vmem>>, %arg6: memref<6x32xf32, #tpu.memory_space<vmem>>, %arg7: memref<1x32xf32, #tpu.memory_space<vmem>>, %arg8: memref<2x32x32xf32, #tpu.memory_space<vmem>>, %arg9: memref<2x1x32xf32, #tpu.memory_space<vmem>>, %arg10: memref<2x32x13xf32, #tpu.memory_space<vmem>>, %arg11: memref<2x1x13xf32, #tpu.memory_space<vmem>>, %arg12: memref<6x5xf32, #tpu.memory_space<vmem>>, %arg13: memref<1x5xf32, #tpu.memory_space<vmem>>, %arg14: memref<64x8xf32, #tpu.memory_space<vmem>>) attributes {dimension_semantics = [#tpu.dimension_semantics<parallel>], iteration_bounds = array<i64: 1>, scalar_prefetch = 0 : i64, scratch_operands = 0 : i64, tpu.core_type = #tpu.core_type<tc>, window_params = [{transform_indices = @transform_0, window_bounds = array<i64: 64, 8>}, {transform_indices = @transform_1, window_bounds = array<i64: 64, 6>}, {pipeline_mode = #tpu.pipeline_mode<synchronous>, transform_indices = @transform_2, window_bounds = array<i64: 8, 32>}, {pipeline_mode = #tpu.pipeline_mode<synchronous>, transform_indices = @transform_3, window_bounds = array<i64: 1, 32>}, {pipeline_mode = #tpu.pipeline_mode<synchronous>, transform_indices = @transform_4, window_bounds = array<i64: 2, 32>}, {pipeline_mode = #tpu.pipeline_mode<synchronous>, transform_indices = @transform_5, window_bounds = array<i64: 6, 32>}, {pipeline_mode = #tpu.pipeline_mode<synchronous>, transform_indices = @transform_6, window_bounds = array<i64: 1, 32>}, {pipeline_mode = #tpu.pipeline_mode<synchronous>, transform_indices = @transform_7, window_bounds = array<i64: 2, 32, 32>}, {pipeline_mode = #tpu.pipeline_mode<synchronous>, transform_indices = @transform_8, window_bounds = array<i64: 2, 1, 32>}, {pipeline_mode = #tpu.pipeline_mode<synchronous>, transform_indices = @transform_9, window_bounds = array<i64: 2, 32, 13>}, {pipeline_mode = #tpu.pipeline_mode<synchronous>, transform_indices = @transform_10, window_bounds = array<i64: 2, 1, 13>}, {pipeline_mode = #tpu.pipeline_mode<synchronous>, transform_indices = @transform_11, window_bounds = array<i64: 6, 5>}, {pipeline_mode = #tpu.pipeline_mode<synchronous>, transform_indices = @transform_12, window_bounds = array<i64: 1, 5>}, {transform_indices = @transform_13, window_bounds = array<i64: 64, 8>}]} {
    %c0 = arith.constant 0 : index
    %c0_0 = arith.constant 0 : index
    %0 = vector.load %arg1[%c0, %c0_0] : memref<64x8xf32, #tpu.memory_space<vmem>>, vector<64x8xf32>
    %1 = vector.extract_strided_slice %0 {offsets = [0, 0], sizes = [64, 2], strides = [1, 1]} : vector<64x8xf32> to vector<64x2xf32>
    %2 = vector.extract_strided_slice %0 {offsets = [0, 2], sizes = [64, 6], strides = [1, 1]} : vector<64x8xf32> to vector<64x6xf32>
    %c0_1 = arith.constant 0 : index
    %c0_2 = arith.constant 0 : index
    %3 = vector.load %arg2[%c0_1, %c0_2] : memref<64x6xf32, #tpu.memory_space<vmem>>, vector<64x6xf32>
    %4 = arith.mulf %3, %3 : vector<64x6xf32>
    %cst = arith.constant dense<0.000000e+00> : vector<64xf32>
    %5 = vector.multi_reduction <add>, %4, %cst [1] : vector<64x6xf32> to vector<64xf32>
    %6 = vector.shape_cast %5 : vector<64xf32> to vector<64x1xf32>
    %cst_3 = arith.constant 5.000000e-01 : f32
    %7 = vector.broadcast %cst_3 : f32 to vector<64x1xf32>
    %8 = arith.mulf %7, %6 : vector<64x1xf32>
    %c0_4 = arith.constant 0 : index
    %c0_5 = arith.constant 0 : index
    %9 = vector.load %arg3[%c0_4, %c0_5] : memref<8x32xf32, #tpu.memory_space<vmem>>, vector<8x32xf32>
    %cst_6 = arith.constant dense<0.000000e+00> : vector<64x32xf32>
    %10 = tpu.matmul %0, %9, %cst_6 {dimension_numbers = #tpu.dot_dimension_numbers<[1], [0], [0], [1], [0, 0, 1, 1], [], []>} : vector<64x8xf32>, vector<8x32xf32>, vector<64x32xf32> -> vector<64x32xf32>
    %c0_7 = arith.constant 0 : index
    %c0_8 = arith.constant 0 : index
    %11 = vector.load %arg4[%c0_7, %c0_8] : memref<1x32xf32, #tpu.memory_space<vmem>>, vector<1x32xf32>
    %12 = vector.broadcast %11 : vector<1x32xf32> to vector<64x32xf32>
    %13 = arith.addf %10, %12 : vector<64x32xf32>
    %cst_9 = arith.constant 0.000000e+00 : f32
    %14 = vector.broadcast %cst_9 : f32 to vector<64x32xf32>
    %15 = arith.maximumf %13, %14 : vector<64x32xf32>
    %c0_10 = arith.constant 0 : index
    %c0_11 = arith.constant 0 : index
    %c0_12 = arith.constant 0 : index
    %16 = vector.load %arg8[%c0_10, %c0_11, %c0_12] : memref<2x32x32xf32, #tpu.memory_space<vmem>>, vector<1x32x32xf32>
    %17 = vector.shape_cast %16 : vector<1x32x32xf32> to vector<32x32xf32>
    %cst_13 = arith.constant dense<0.000000e+00> : vector<64x32xf32>
    %18 = tpu.matmul %15, %17, %cst_13 {dimension_numbers = #tpu.dot_dimension_numbers<[1], [0], [0], [1], [0, 0, 1, 1], [], []>} : vector<64x32xf32>, vector<32x32xf32>, vector<64x32xf32> -> vector<64x32xf32>
    %c0_14 = arith.constant 0 : index
    %c0_15 = arith.constant 0 : index
    %c0_16 = arith.constant 0 : index
    %19 = vector.load %arg9[%c0_14, %c0_15, %c0_16] : memref<2x1x32xf32, #tpu.memory_space<vmem>>, vector<1x1x32xf32>
    %20 = vector.shape_cast %19 : vector<1x1x32xf32> to vector<1x32xf32>
    %21 = vector.broadcast %20 : vector<1x32xf32> to vector<64x32xf32>
    %22 = arith.addf %18, %21 : vector<64x32xf32>
    %cst_17 = arith.constant 0.000000e+00 : f32
    %23 = vector.broadcast %cst_17 : f32 to vector<64x32xf32>
    %24 = arith.maximumf %22, %23 : vector<64x32xf32>
    %c0_18 = arith.constant 0 : index
    %c0_19 = arith.constant 0 : index
    %c0_20 = arith.constant 0 : index
    %25 = vector.load %arg10[%c0_18, %c0_19, %c0_20] : memref<2x32x13xf32, #tpu.memory_space<vmem>>, vector<1x32x13xf32>
    %26 = vector.shape_cast %25 : vector<1x32x13xf32> to vector<32x13xf32>
    %cst_21 = arith.constant dense<0.000000e+00> : vector<64x13xf32>
    %27 = tpu.matmul %24, %26, %cst_21 {dimension_numbers = #tpu.dot_dimension_numbers<[1], [0], [0], [1], [0, 0, 1, 1], [], []>} : vector<64x32xf32>, vector<32x13xf32>, vector<64x13xf32> -> vector<64x13xf32>
    %c0_22 = arith.constant 0 : index
    %c0_23 = arith.constant 0 : index
    %c0_24 = arith.constant 0 : index
    %28 = vector.load %arg11[%c0_22, %c0_23, %c0_24] : memref<2x1x13xf32, #tpu.memory_space<vmem>>, vector<1x1x13xf32>
    %29 = vector.shape_cast %28 : vector<1x1x13xf32> to vector<1x13xf32>
    %30 = vector.broadcast %29 : vector<1x13xf32> to vector<64x13xf32>
    %31 = arith.addf %27, %30 : vector<64x13xf32>
    %32 = vector.extract_strided_slice %31 {offsets = [0, 0], sizes = [64, 6], strides = [1, 1]} : vector<64x13xf32> to vector<64x6xf32>
    %33 = vector.extract_strided_slice %31 {offsets = [0, 6], sizes = [64, 6], strides = [1, 1]} : vector<64x13xf32> to vector<64x6xf32>
    %34 = vector.extract_strided_slice %31 {offsets = [0, 12], sizes = [64, 1], strides = [1, 1]} : vector<64x13xf32> to vector<64x1xf32>
    %35 = math.exp %33 : vector<64x6xf32>
    %36 = arith.mulf %35, %3 : vector<64x6xf32>
    %37 = arith.addf %36, %32 : vector<64x6xf32>
    %cst_25 = arith.constant -5.51363134 : f32
    %38 = vector.broadcast %cst_25 : f32 to vector<64x1xf32>
    %39 = arith.subf %38, %34 : vector<64x1xf32>
    %40 = arith.subf %39, %8 : vector<64x1xf32>
    %c0_26 = arith.constant 0 : index
    %c0_27 = arith.constant 0 : index
    %41 = vector.load %arg12[%c0_26, %c0_27] : memref<6x5xf32, #tpu.memory_space<vmem>>, vector<6x5xf32>
    %cst_28 = arith.constant dense<0.000000e+00> : vector<64x5xf32>
    %42 = tpu.matmul %37, %41, %cst_28 {dimension_numbers = #tpu.dot_dimension_numbers<[1], [0], [0], [1], [0, 0, 1, 1], [], []>} : vector<64x6xf32>, vector<6x5xf32>, vector<64x5xf32> -> vector<64x5xf32>
    %c0_29 = arith.constant 0 : index
    %c0_30 = arith.constant 0 : index
    %43 = vector.load %arg13[%c0_29, %c0_30] : memref<1x5xf32, #tpu.memory_space<vmem>>, vector<1x5xf32>
    %44 = vector.broadcast %43 : vector<1x5xf32> to vector<64x5xf32>
    %45 = arith.addf %42, %44 : vector<64x5xf32>
    %46 = vector.extract_strided_slice %45 {offsets = [0, 0], sizes = [64, 2], strides = [1, 1]} : vector<64x5xf32> to vector<64x2xf32>
    %47 = vector.extract_strided_slice %45 {offsets = [0, 2], sizes = [64, 2], strides = [1, 1]} : vector<64x5xf32> to vector<64x2xf32>
    %48 = vector.extract_strided_slice %45 {offsets = [0, 4], sizes = [64, 1], strides = [1, 1]} : vector<64x5xf32> to vector<64x1xf32>
    %49 = math.exp %46 : vector<64x2xf32>
    %50 = arith.mulf %1, %49 : vector<64x2xf32>
    %51 = arith.addf %50, %47 : vector<64x2xf32>
    %c0_31 = arith.constant 0 : index
    %c0_32 = arith.constant 0 : index
    %52 = vector.load %arg5[%c0_31, %c0_32] : memref<2x32xf32, #tpu.memory_space<vmem>>, vector<2x32xf32>
    %cst_33 = arith.constant dense<0.000000e+00> : vector<64x32xf32>
    %53 = tpu.matmul %51, %52, %cst_33 {dimension_numbers = #tpu.dot_dimension_numbers<[1], [0], [0], [1], [0, 0, 1, 1], [], []>} : vector<64x2xf32>, vector<2x32xf32>, vector<64x32xf32> -> vector<64x32xf32>
    %c0_34 = arith.constant 0 : index
    %c0_35 = arith.constant 0 : index
    %54 = vector.load %arg6[%c0_34, %c0_35] : memref<6x32xf32, #tpu.memory_space<vmem>>, vector<6x32xf32>
    %cst_36 = arith.constant dense<0.000000e+00> : vector<64x32xf32>
    %55 = tpu.matmul %2, %54, %cst_36 {dimension_numbers = #tpu.dot_dimension_numbers<[1], [0], [0], [1], [0, 0, 1, 1], [], []>} : vector<64x6xf32>, vector<6x32xf32>, vector<64x32xf32> -> vector<64x32xf32>
    %56 = arith.addf %53, %55 : vector<64x32xf32>
    %c0_37 = arith.constant 0 : index
    %c0_38 = arith.constant 0 : index
    %57 = vector.load %arg7[%c0_37, %c0_38] : memref<1x32xf32, #tpu.memory_space<vmem>>, vector<1x32xf32>
    %58 = vector.broadcast %57 : vector<1x32xf32> to vector<64x32xf32>
    %59 = arith.addf %56, %58 : vector<64x32xf32>
    %cst_39 = arith.constant 0.000000e+00 : f32
    %60 = vector.broadcast %cst_39 : f32 to vector<64x32xf32>
    %61 = arith.maximumf %59, %60 : vector<64x32xf32>
    %c1 = arith.constant 1 : index
    %c0_40 = arith.constant 0 : index
    %c0_41 = arith.constant 0 : index
    %62 = vector.load %arg8[%c1, %c0_40, %c0_41] : memref<2x32x32xf32, #tpu.memory_space<vmem>>, vector<1x32x32xf32>
    %63 = vector.shape_cast %62 : vector<1x32x32xf32> to vector<32x32xf32>
    %cst_42 = arith.constant dense<0.000000e+00> : vector<64x32xf32>
    %64 = tpu.matmul %61, %63, %cst_42 {dimension_numbers = #tpu.dot_dimension_numbers<[1], [0], [0], [1], [0, 0, 1, 1], [], []>} : vector<64x32xf32>, vector<32x32xf32>, vector<64x32xf32> -> vector<64x32xf32>
    %c1_43 = arith.constant 1 : index
    %c0_44 = arith.constant 0 : index
    %c0_45 = arith.constant 0 : index
    %65 = vector.load %arg9[%c1_43, %c0_44, %c0_45] : memref<2x1x32xf32, #tpu.memory_space<vmem>>, vector<1x1x32xf32>
    %66 = vector.shape_cast %65 : vector<1x1x32xf32> to vector<1x32xf32>
    %67 = vector.broadcast %66 : vector<1x32xf32> to vector<64x32xf32>
    %68 = arith.addf %64, %67 : vector<64x32xf32>
    %cst_46 = arith.constant 0.000000e+00 : f32
    %69 = vector.broadcast %cst_46 : f32 to vector<64x32xf32>
    %70 = arith.maximumf %68, %69 : vector<64x32xf32>
    %c1_47 = arith.constant 1 : index
    %c0_48 = arith.constant 0 : index
    %c0_49 = arith.constant 0 : index
    %71 = vector.load %arg10[%c1_47, %c0_48, %c0_49] : memref<2x32x13xf32, #tpu.memory_space<vmem>>, vector<1x32x13xf32>
    %72 = vector.shape_cast %71 : vector<1x32x13xf32> to vector<32x13xf32>
    %cst_50 = arith.constant dense<0.000000e+00> : vector<64x13xf32>
    %73 = tpu.matmul %70, %72, %cst_50 {dimension_numbers = #tpu.dot_dimension_numbers<[1], [0], [0], [1], [0, 0, 1, 1], [], []>} : vector<64x32xf32>, vector<32x13xf32>, vector<64x13xf32> -> vector<64x13xf32>
    %c1_51 = arith.constant 1 : index
    %c0_52 = arith.constant 0 : index
    %c0_53 = arith.constant 0 : index
    %74 = vector.load %arg11[%c1_51, %c0_52, %c0_53] : memref<2x1x13xf32, #tpu.memory_space<vmem>>, vector<1x1x13xf32>
    %75 = vector.shape_cast %74 : vector<1x1x13xf32> to vector<1x13xf32>
    %76 = vector.broadcast %75 : vector<1x13xf32> to vector<64x13xf32>
    %77 = arith.addf %73, %76 : vector<64x13xf32>
    %78 = vector.extract_strided_slice %77 {offsets = [0, 0], sizes = [64, 6], strides = [1, 1]} : vector<64x13xf32> to vector<64x6xf32>
    %79 = vector.extract_strided_slice %77 {offsets = [0, 6], sizes = [64, 6], strides = [1, 1]} : vector<64x13xf32> to vector<64x6xf32>
    %80 = vector.extract_strided_slice %77 {offsets = [0, 12], sizes = [64, 1], strides = [1, 1]} : vector<64x13xf32> to vector<64x1xf32>
    %81 = arith.subf %37, %78 : vector<64x6xf32>
    %cst_54 = arith.constant -5.51363134 : f32
    %82 = vector.broadcast %cst_54 : f32 to vector<64x1xf32>
    %83 = arith.subf %82, %80 : vector<64x1xf32>
    %84 = arith.mulf %81, %81 : vector<64x6xf32>
    %85 = math.exp %79 : vector<64x6xf32>
    %86 = arith.mulf %84, %85 : vector<64x6xf32>
    %cst_55 = arith.constant dense<0.000000e+00> : vector<64xf32>
    %87 = vector.multi_reduction <add>, %86, %cst_55 [1] : vector<64x6xf32> to vector<64xf32>
    %88 = vector.shape_cast %87 : vector<64xf32> to vector<64x1xf32>
    %cst_56 = arith.constant 5.000000e-01 : f32
    %89 = vector.broadcast %cst_56 : f32 to vector<64x1xf32>
    %90 = arith.mulf %89, %88 : vector<64x1xf32>
    %91 = arith.subf %83, %90 : vector<64x1xf32>
    %92 = arith.addf %48, %91 : vector<64x1xf32>
    %93 = arith.subf %92, %40 : vector<64x1xf32>
    %cst_57 = arith.constant 0.000000e+00 : f32
    %94 = vector.broadcast %cst_57 : f32 to vector<64x5xf32>
    %95 = tpu.concatenate %51, %93, %94 in 1 : vector<64x2xf32>, vector<64x1xf32>, vector<64x5xf32> -> vector<64x8xf32>
    %c0_58 = arith.constant 0 : index
    %c0_59 = arith.constant 0 : index
    %96 = vector.load %arg14[%c0_58, %c0_59] : memref<64x8xf32, #tpu.memory_space<vmem>>, vector<64x8xf32>
    tpu.vector_store %arg14[%c0_58, %c0_59], %95 {strides = array<i32>} : memref<64x8xf32, #tpu.memory_space<vmem>>, vector<64x8xf32>,
    return
  }
  func.func @transform_0(%arg0: i32) -> (i32, i32) {
    %c0_i32 = arith.constant 0 : i32
    %c0_i32_0 = arith.constant 0 : i32
    return %arg0, %c0_i32 : i32, i32
  }
  func.func @transform_1(%arg0: i32) -> (i32, i32) {
    %c0_i32 = arith.constant 0 : i32
    %c0_i32_0 = arith.constant 0 : i32
    return %arg0, %c0_i32 : i32, i32
  }
  func.func @transform_2(%arg0: i32) -> (i32, i32) {
    %c0_i32 = arith.constant 0 : i32
    %c0_i32_0 = arith.constant 0 : i32
    %c0_i32_1 = arith.constant 0 : i32
    return %c0_i32, %c0_i32_0 : i32, i32
  }
  func.func @transform_3(%arg0: i32) -> (i32, i32) {
    %c0_i32 = arith.constant 0 : i32
    %c0_i32_0 = arith.constant 0 : i32
    %c0_i32_1 = arith.constant 0 : i32
    return %c0_i32, %c0_i32_0 : i32, i32
  }
  func.func @transform_4(%arg0: i32) -> (i32, i32) {
    %c0_i32 = arith.constant 0 : i32
    %c0_i32_0 = arith.constant 0 : i32
    %c0_i32_1 = arith.constant 0 : i32
    return %c0_i32, %c0_i32_0 : i32, i32
  }
  func.func @transform_5(%arg0: i32) -> (i32, i32) {
    %c0_i32 = arith.constant 0 : i32
    %c0_i32_0 = arith.constant 0 : i32
    %c0_i32_1 = arith.constant 0 : i32
    return %c0_i32, %c0_i32_0 : i32, i32
  }
  func.func @transform_6(%arg0: i32) -> (i32, i32) {
    %c0_i32 = arith.constant 0 : i32
    %c0_i32_0 = arith.constant 0 : i32
    %c0_i32_1 = arith.constant 0 : i32
    return %c0_i32, %c0_i32_0 : i32, i32
  }
  func.func @transform_7(%arg0: i32) -> (i32, i32, i32) {
    %c0_i32 = arith.constant 0 : i32
    %c0_i32_0 = arith.constant 0 : i32
    %c0_i32_1 = arith.constant 0 : i32
    %c0_i32_2 = arith.constant 0 : i32
    return %c0_i32, %c0_i32_0, %c0_i32_1 : i32, i32, i32
  }
  func.func @transform_8(%arg0: i32) -> (i32, i32, i32) {
    %c0_i32 = arith.constant 0 : i32
    %c0_i32_0 = arith.constant 0 : i32
    %c0_i32_1 = arith.constant 0 : i32
    %c0_i32_2 = arith.constant 0 : i32
    return %c0_i32, %c0_i32_0, %c0_i32_1 : i32, i32, i32
  }
  func.func @transform_9(%arg0: i32) -> (i32, i32, i32) {
    %c0_i32 = arith.constant 0 : i32
    %c0_i32_0 = arith.constant 0 : i32
    %c0_i32_1 = arith.constant 0 : i32
    %c0_i32_2 = arith.constant 0 : i32
    return %c0_i32, %c0_i32_0, %c0_i32_1 : i32, i32, i32
  }
  func.func @transform_10(%arg0: i32) -> (i32, i32, i32) {
    %c0_i32 = arith.constant 0 : i32
    %c0_i32_0 = arith.constant 0 : i32
    %c0_i32_1 = arith.constant 0 : i32
    %c0_i32_2 = arith.constant 0 : i32
    return %c0_i32, %c0_i32_0, %c0_i32_1 : i32, i32, i32
  }
  func.func @transform_11(%arg0: i32) -> (i32, i32) {
    %c0_i32 = arith.constant 0 : i32
    %c0_i32_0 = arith.constant 0 : i32
    %c0_i32_1 = arith.constant 0 : i32
    return %c0_i32, %c0_i32_0 : i32, i32
  }
  func.func @transform_12(%arg0: i32) -> (i32, i32) {
    %c0_i32 = arith.constant 0 : i32
    %c0_i32_0 = arith.constant 0 : i32
    %c0_i32_1 = arith.constant 0 : i32
    return %c0_i32, %c0_i32_0 : i32, i32
  }
  func.func @transform_13(%arg0: i32) -> (i32, i32) {
    %c0_i32 = arith.constant 0 : i32
    %c0_i32_0 = arith.constant 0 : i32
    return %arg0, %c0_i32 : i32, i32
  }
}

</mosaic_0001>

<llo_original>
// kernel: cif_step_forward.1
$region0: #{cif_step_forward.1}
  #allocation0 [shape = 'u32[]', space=smem, size = 0x4, offset = 0x4, fixed_abs, tag = 'smem constant byte address 0x4 - core index']
  #allocation1 [shape = 'u32[72,128]{1,0:T(1,128)}', space=vmem, size = 0x9000, scoped, tag = 'internal scratch']
  %s0 = inlined_call_operand.vmem [shape: f32[64,8], index: 0, kind: input, shape index: {}]
  %s1 = inlined_call_operand.vmem [shape: f32[64,6], index: 1, kind: input, shape index: {}]
  %s2 = inlined_call_operand.vmem [shape: f32[8,32], index: 2, kind: input, shape index: {}]
  %s3 = inlined_call_operand.vmem [shape: f32[1,32], index: 3, kind: input, shape index: {}]
  %s4 = inlined_call_operand.vmem [shape: f32[2,32], index: 4, kind: input, shape index: {}]
  %s5 = inlined_call_operand.vmem [shape: f32[6,32], index: 5, kind: input, shape index: {}]
  %s6 = inlined_call_operand.vmem [shape: f32[1,32], index: 6, kind: input, shape index: {}]
  %s7 = inlined_call_operand.vmem [shape: f32[2,32,32], index: 7, kind: input, shape index: {}]
  %s8 = inlined_call_operand.vmem [shape: f32[2,1,32], index: 8, kind: input, shape index: {}]
  %s9 = inlined_call_operand.vmem [shape: f32[2,32,13], index: 9, kind: input, shape index: {}]
  %s10 = inlined_call_operand.vmem [shape: f32[2,1,13], index: 10, kind: input, shape index: {}]
  %s11 = inlined_call_operand.vmem [shape: f32[6,5], index: 11, kind: input, shape index: {}]
  %s12 = inlined_call_operand.vmem [shape: f32[1,5], index: 12, kind: input, shape index: {}]
  %s13 = inlined_call_operand.vmem [shape: f32[64,8], index: 13, kind: output, shape index: {}]
  %s14 = sld [smem:[#allocation0]]
  $region62: #{cif_step_forward.1} parent=0
    _
  %s16 = ssub.s32 1, %s14
  %s17 = scalar_select 0, %s16, %s14
  // Predicated region
  $region2: #{cif_step_forward.1} parent=0 // pred_check
    _
  $region3: #{cif_step_forward.1} parent=0 // pred_check_branch
    %19 = sbr.rel (0) target = $region5
  $region4: #{cif_step_forward.1} parent=0 // pred_region
    _
  $region5: #{cif_step_forward.1} parent=0 // pred_fallthru
    _
  // Predicated region
  $region6: #{cif_step_forward.1} parent=0 // pred_check
    _
  $region7: #{cif_step_forward.1} parent=0 // pred_check_branch
    %21 = sbr.rel (0) target = $region9
  $region8: #{cif_step_forward.1} parent=0 // pred_region
    _
  $region9: #{cif_step_forward.1} parent=0 // pred_fallthru
    _
  // Predicated region
  $region10: #{cif_step_forward.1} parent=0 // pred_check
    _
  $region11: #{cif_step_forward.1} parent=0 // pred_check_branch
    %23 = sbr.rel (0) target = $region13
  $region12: #{cif_step_forward.1} parent=0 // pred_region
    _
  $region13: #{cif_step_forward.1} parent=0 // pred_fallthru
    _
  // Predicated region
  $region14: #{cif_step_forward.1} parent=0 // pred_check
    _
  $region15: #{cif_step_forward.1} parent=0 // pred_check_branch
    %25 = sbr.rel (0) target = $region17
  $region16: #{cif_step_forward.1} parent=0 // pred_region
    _
  $region17: #{cif_step_forward.1} parent=0 // pred_fallthru
    _
  // Predicated region
  $region18: #{cif_step_forward.1} parent=0 // pred_check
    _
  $region19: #{cif_step_forward.1} parent=0 // pred_check_branch
    %27 = sbr.rel (0) target = $region21
  $region20: #{cif_step_forward.1} parent=0 // pred_region
    _
  $region21: #{cif_step_forward.1} parent=0 // pred_fallthru
    _
  // Predicated region
  $region22: #{cif_step_forward.1} parent=0 // pred_check
    _
  $region23: #{cif_step_forward.1} parent=0 // pred_check_branch
    %29 = sbr.rel (0) target = $region25
  $region24: #{cif_step_forward.1} parent=0 // pred_region
    _
  $region25: #{cif_step_forward.1} parent=0 // pred_fallthru
    _
  // Predicated region
  $region26: #{cif_step_forward.1} parent=0 // pred_check
    _
  $region27: #{cif_step_forward.1} parent=0 // pred_check_branch
    %31 = sbr.rel (0) target = $region29
  $region28: #{cif_step_forward.1} parent=0 // pred_region
    _
  $region29: #{cif_step_forward.1} parent=0 // pred_fallthru
    _
  // Predicated region
  $region30: #{cif_step_forward.1} parent=0 // pred_check
    _
  $region31: #{cif_step_forward.1} parent=0 // pred_check_branch
    %33 = sbr.rel (0) target = $region33
  $region32: #{cif_step_forward.1} parent=0 // pred_region
    _
  $region33: #{cif_step_forward.1} parent=0 // pred_fallthru
    _
  // Predicated region
  $region34: #{cif_step_forward.1} parent=0 // pred_check
    _
  $region35: #{cif_step_forward.1} parent=0 // pred_check_branch
    %35 = sbr.rel (0) target = $region37
  $region36: #{cif_step_forward.1} parent=0 // pred_region
    _
  $region37: #{cif_step_forward.1} parent=0 // pred_fallthru
    _
  // Predicated region
  $region38: #{cif_step_forward.1} parent=0 // pred_check
    _
  $region39: #{cif_step_forward.1} parent=0 // pred_check_branch
    %37 = sbr.rel (0) target = $region41
  $region40: #{cif_step_forward.1} parent=0 // pred_region
    _
  $region41: #{cif_step_forward.1} parent=0 // pred_fallthru
    _
  // Predicated region
  $region42: #{cif_step_forward.1} parent=0 // pred_check
    _
  $region43: #{cif_step_forward.1} parent=0 // pred_check_branch
    %39 = sbr.rel (0) target = $region45
  $region44: #{cif_step_forward.1} parent=0 // pred_region
    _
  $region45: #{cif_step_forward.1} parent=0 // pred_fallthru
    _
  // Predicated region
  $region46: #{cif_step_forward.1} parent=0 // pred_check
    _
  $region47: #{cif_step_forward.1} parent=0 // pred_check_branch
    %41 = sbr.rel (0) target = $region49
  $region48: #{cif_step_forward.1} parent=0 // pred_region
    _
  $region49: #{cif_step_forward.1} parent=0 // pred_fallthru
    _
  // Predicated region
  $region50: #{cif_step_forward.1} parent=0 // pred_check
    _
  $region51: #{cif_step_forward.1} parent=0 // pred_check_branch
    %43 = sbr.rel (0) target = $region53
  $region52: #{cif_step_forward.1} parent=0 // pred_region
    _
  $region53: #{cif_step_forward.1} parent=0 // pred_fallthru
    _
  %v44 = vld [vmem:[%s0] sm:$0xff]
  %v45 = vld [vmem:[%s0 + $0x8] sm:$0xff]
  %v46 = vld [vmem:[%s0 + $0x10] sm:$0xff]
  %v47 = vld [vmem:[%s0 + $0x18] sm:$0xff]
  %v48 = vld [vmem:[%s0 + $0x20] sm:$0xff]
  %v49 = vld [vmem:[%s0 + $0x28] sm:$0xff]
  %v50 = vld [vmem:[%s0 + $0x30] sm:$0xff]
  %v51 = vld [vmem:[%s0 + $0x38] sm:$0xff]
  %v52 = vld [vmem:[%s1] sm:$0xff]
  %v53 = vld [vmem:[%s1 + $0x8] sm:$0xff]
  %v54 = vld [vmem:[%s1 + $0x10] sm:$0xff]
  %v55 = vld [vmem:[%s1 + $0x18] sm:$0xff]
  %v56 = vld [vmem:[%s1 + $0x20] sm:$0xff]
  %v57 = vld [vmem:[%s1 + $0x28] sm:$0xff]
  %v58 = vld [vmem:[%s1 + $0x30] sm:$0xff]
  %v59 = vld [vmem:[%s1 + $0x38] sm:$0xff]
  %v60 = vmul.f32 %v52, %v52
  %v61 = vmul.f32 %v53, %v53
  %v62 = vmul.f32 %v54, %v54
  %v63 = vmul.f32 %v55, %v55
  %v64 = vmul.f32 %v56, %v56
  %v65 = vmul.f32 %v57, %v57
  %v66 = vmul.f32 %v58, %v58
  %v67 = vmul.f32 %v59, %v59
  %vm68 = vcmask 48128
  %v69 = vsel %vm68, %v60, 0.0
  %70 = vadd.xlane.f32.xlu0 %v69
  %v71 = vpop.xlane.xlu0 %70
  %v72 = vsel %vm68, %v61, 0.0
  %73 = vadd.xlane.f32.xlu0 %v72
  %v74 = vpop.xlane.xlu0 %73
  %v75 = vsel %vm68, %v62, 0.0
  %76 = vadd.xlane.f32.xlu0 %v75
  %v77 = vpop.xlane.xlu0 %76
  %v78 = vsel %vm68, %v63, 0.0
  %79 = vadd.xlane.f32.xlu0 %v78
  %v80 = vpop.xlane.xlu0 %79
  %v81 = vsel %vm68, %v64, 0.0
  %82 = vadd.xlane.f32.xlu0 %v81
  %v83 = vpop.xlane.xlu0 %82
  %v84 = vsel %vm68, %v65, 0.0
  %85 = vadd.xlane.f32.xlu0 %v84
  %v86 = vpop.xlane.xlu0 %85
  %v87 = vsel %vm68, %v66, 0.0
  %88 = vadd.xlane.f32.xlu0 %v87
  %v89 = vpop.xlane.xlu0 %88
  %v90 = vsel %vm68, %v67, 0.0
  %91 = vadd.xlane.f32.xlu0 %v90
  %v92 = vpop.xlane.xlu0 %91
  %v93 = vmul.f32 %v71, 0.5
  %v94 = vmul.f32 %v74, 0.5
  %v95 = vmul.f32 %v77, 0.5
  %v96 = vmul.f32 %v80, 0.5
  %v97 = vmul.f32 %v83, 0.5
  %v98 = vmul.f32 %v86, 0.5
  %v99 = vmul.f32 %v89, 0.5
  %v100 = vmul.f32 %v92, 0.5
  %v101 = vld [vmem:[%s2] sm:$0xff]
  %v102 = vld [vmem:[%s3] sm:$0x1]
  %v104 = vperm.slane %v102, 0
  %vm106 = vcmask 64512
  %v108 = vsel %vm106, %v44, 0
  %v111 = vsel %vm106, %v45, 0
  %v114 = vsel %vm106, %v46, 0
  %v117 = vsel %vm106, %v47, 0
  %v120 = vsel %vm106, %v48, 0
  %v123 = vsel %vm106, %v49, 0
  %v126 = vsel %vm106, %v50, 0
  %v129 = vsel %vm106, %v51, 0
  %131 = vmatpush.msra.mxu0 0.0
  %132 = vmatpush.msra.mxu0 0.0
  %133 = vmatpush.msra.mxu0 0.0
  %134 = vmatpush.msra.mxu0 0.0
  %135 = vmatpush.msra.mxu0 0.0
  %136 = vmatpush.msra.mxu0 0.0
  %137 = vmatpush.msra.mxu0 0.0
  %138 = vmatpush.msra.mxu0 0.0
  %139 = vmatpush.msra.mxu0 0.0
  %140 = vmatpush.msra.mxu0 0.0
  %141 = vmatpush.msra.mxu0 0.0
  %142 = vmatpush.msra.mxu0 0.0
  %143 = vmatpush.msra.mxu0 0.0
  %144 = vmatpush.msra.mxu0 0.0
  %145 = vmatpush.msra.mxu0 0.0
  %146 = vmatpush.msra.mxu0 %v101
  %147 = vmatmul.f32.gmra.mxu0 %v108
  %v148 = vpop.f32.mrf.mxu0
  %v149 = vadd.f32 %v104, %v148
  %150 = vmatmul.f32.gmra.mxu0 %v111
  %v151 = vpop.f32.mrf.mxu0
  %v152 = vadd.f32 %v104, %v151
  %153 = vmatmul.f32.gmra.mxu0 %v114
  %v154 = vpop.f32.mrf.mxu0
  %v155 = vadd.f32 %v104, %v154
  %156 = vmatmul.f32.gmra.mxu0 %v117
  %v157 = vpop.f32.mrf.mxu0
  %v158 = vadd.f32 %v104, %v157
  %159 = vmatmul.f32.gmra.mxu0 %v120
  %v160 = vpop.f32.mrf.mxu0
  %v161 = vadd.f32 %v104, %v160
  %162 = vmatmul.f32.gmra.mxu0 %v123
  %v163 = vpop.f32.mrf.mxu0
  %v164 = vadd.f32 %v104, %v163
  %165 = vmatmul.f32.gmra.mxu0 %v126
  %v166 = vpop.f32.mrf.mxu0
  %v167 = vadd.f32 %v104, %v166
  %168 = vmatmul.f32.gmra.mxu0 %v129
  %v169 = vpop.f32.mrf.mxu0
  %v170 = vadd.f32 %v104, %v169
  %171 = vdwg.mxu0
  %v172 = vmax.f32 %v149, 0.0
  %v173 = vmax.f32 %v152, 0.0
  %v174 = vmax.f32 %v155, 0.0
  %v175 = vmax.f32 %v158, 0.0
  %v176 = vmax.f32 %v161, 0.0
  %v177 = vmax.f32 %v164, 0.0
  %v178 = vmax.f32 %v167, 0.0
  %v179 = vmax.f32 %v170, 0.0
  %v180 = vld [vmem:[%s7] sm:$0xff]
  %v181 = vld [vmem:[%s7 + $0x8] sm:$0xff]
  %v182 = vld [vmem:[%s7 + $0x10] sm:$0xff]
  %v183 = vld [vmem:[%s7 + $0x18] sm:$0xff]
  %v184 = vld [vmem:[%s8] sm:$0x1]
  %v186 = vperm.slane %v184, 0
  %vm188 = vcmask 261120
  %v190 = vsel %vm188, %v172, 0
  %v193 = vsel %vm188, %v173, 0
  %v196 = vsel %vm188, %v174, 0
  %v199 = vsel %vm188, %v175, 0
  %v202 = vsel %vm188, %v176, 0
  %v205 = vsel %vm188, %v177, 0
  %v208 = vsel %vm188, %v178, 0
  %v211 = vsel %vm188, %v179, 0
  %213 = vmatpush.msra.mxu0 0.0
  %214 = vmatpush.msra.mxu0 0.0
  %215 = vmatpush.msra.mxu0 0.0
  %216 = vmatpush.msra.mxu0 0.0
  %217 = vmatpush.msra.mxu0 0.0
  %218 = vmatpush.msra.mxu0 0.0
  %219 = vmatpush.msra.mxu0 0.0
  %220 = vmatpush.msra.mxu0 0.0
  %221 = vmatpush.msra.mxu0 0.0
  %222 = vmatpush.msra.mxu0 0.0
  %223 = vmatpush.msra.mxu0 0.0
  %224 = vmatpush.msra.mxu0 0.0
  %225 = vmatpush.msra.mxu0 %v183
  %226 = vmatpush.msra.mxu0 %v182
  %227 = vmatpush.msra.mxu0 %v181
  %228 = vmatpush.msra.mxu0 %v180
  %229 = vmatmul.f32.gmra.mxu0 %v190
  %v230 = vpop.f32.mrf.mxu0
  %v231 = vadd.f32 %v186, %v230
  %232 = vmatmul.f32.gmra.mxu0 %v193
  %v233 = vpop.f32.mrf.mxu0
  %v234 = vadd.f32 %v186, %v233
  %235 = vmatmul.f32.gmra.mxu0 %v196
  %v236 = vpop.f32.mrf.mxu0
  %v237 = vadd.f32 %v186, %v236
  %238 = vmatmul.f32.gmra.mxu0 %v199
  %v239 = vpop.f32.mrf.mxu0
  %v240 = vadd.f32 %v186, %v239
  %241 = vmatmul.f32.gmra.mxu0 %v202
  %v242 = vpop.f32.mrf.mxu0
  %v243 = vadd.f32 %v186, %v242
  %244 = vmatmul.f32.gmra.mxu0 %v205
  %v245 = vpop.f32.mrf.mxu0
  %v246 = vadd.f32 %v186, %v245
  %247 = vmatmul.f32.gmra.mxu0 %v208
  %v248 = vpop.f32.mrf.mxu0
  %v249 = vadd.f32 %v186, %v248
  %250 = vmatmul.f32.gmra.mxu0 %v211
  %v251 = vpop.f32.mrf.mxu0
  %v252 = vadd.f32 %v186, %v251
  %253 = vdwg.mxu0
  %v254 = vmax.f32 %v231, 0.0
  %v255 = vmax.f32 %v234, 0.0
  %v256 = vmax.f32 %v237, 0.0
  %v257 = vmax.f32 %v240, 0.0
  %v258 = vmax.f32 %v243, 0.0
  %v259 = vmax.f32 %v246, 0.0
  %v260 = vmax.f32 %v249, 0.0
  %v261 = vmax.f32 %v252, 0.0
  %v262 = vld [vmem:[%s9] sm:$0xff]
  %v263 = vld [vmem:[%s9 + $0x8] sm:$0xff]
  %v264 = vld [vmem:[%s9 + $0x10] sm:$0xff]
  %v265 = vld [vmem:[%s9 + $0x18] sm:$0xff]
  %v266 = vld [vmem:[%s10] sm:$0x1]
  %v268 = vperm.slane %v266, 0
  %v271 = vsel %vm188, %v254, 0
  %v274 = vsel %vm188, %v255, 0
  %v277 = vsel %vm188, %v256, 0
  %v280 = vsel %vm188, %v257, 0
  %v283 = vsel %vm188, %v258, 0
  %v286 = vsel %vm188, %v259, 0
  %v289 = vsel %vm188, %v260, 0
  %v292 = vsel %vm188, %v261, 0
  %294 = vmatpush.msra.mxu0 0.0
  %295 = vmatpush.msra.mxu0 0.0
  %296 = vmatpush.msra.mxu0 0.0
  %297 = vmatpush.msra.mxu0 0.0
  %298 = vmatpush.msra.mxu0 0.0
  %299 = vmatpush.msra.mxu0 0.0
  %300 = vmatpush.msra.mxu0 0.0
  %301 = vmatpush.msra.mxu0 0.0
  %302 = vmatpush.msra.mxu0 0.0
  %303 = vmatpush.msra.mxu0 0.0
  %304 = vmatpush.msra.mxu0 0.0
  %305 = vmatpush.msra.mxu0 0.0
  %306 = vmatpush.msra.mxu0 %v265
  %307 = vmatpush.msra.mxu0 %v264
  %308 = vmatpush.msra.mxu0 %v263
  %309 = vmatpush.msra.mxu0 %v262
  %310 = vmatmul.f32.gmra.mxu0 %v271
  %v311 = vpop.f32.mrf.mxu0
  %v312 = vadd.f32 %v268, %v311
  %313 = vmatmul.f32.gmra.mxu0 %v274
  %v314 = vpop.f32.mrf.mxu0
  %v315 = vadd.f32 %v268, %v314
  %316 = vmatmul.f32.gmra.mxu0 %v277
  %v317 = vpop.f32.mrf.mxu0
  %v318 = vadd.f32 %v268, %v317
  %319 = vmatmul.f32.gmra.mxu0 %v280
  %v320 = vpop.f32.mrf.mxu0
  %v321 = vadd.f32 %v268, %v320
  %322 = vmatmul.f32.gmra.mxu0 %v283
  %v323 = vpop.f32.mrf.mxu0
  %v324 = vadd.f32 %v268, %v323
  %325 = vmatmul.f32.gmra.mxu0 %v286
  %v326 = vpop.f32.mrf.mxu0
  %v327 = vadd.f32 %v268, %v326
  %328 = vmatmul.f32.gmra.mxu0 %v289
  %v329 = vpop.f32.mrf.mxu0
  %v330 = vadd.f32 %v268, %v329
  %331 = vmatmul.f32.gmra.mxu0 %v292
  %v332 = vpop.f32.mrf.mxu0
  %v333 = vadd.f32 %v268, %v332
  %334 = vdwg.mxu0
  %v335 = vmul.f32 %v312, 1.442695
  %v336 = vpow.pop %v335
  %v337 = vmul.f32 %v315, 1.442695
  %v338 = vpow.pop %v337
  %v339 = vmul.f32 %v318, 1.442695
  %v340 = vpow.pop %v339
  %v341 = vmul.f32 %v321, 1.442695
  %v342 = vpow.pop %v341
  %v343 = vmul.f32 %v324, 1.442695
  %v344 = vpow.pop %v343
  %v345 = vmul.f32 %v327, 1.442695
  %v346 = vpow.pop %v345
  %v347 = vmul.f32 %v330, 1.442695
  %v348 = vpow.pop %v347
  %v349 = vmul.f32 %v333, 1.442695
  %v350 = vpow.pop %v349
  %359 = vrot.lane.b32.xlu0 %v52, 6
  %v360 = vpop.permute.xlu0 %359
  %361 = vrot.lane.b32.xlu0 %v53, 6
  %v362 = vpop.permute.xlu0 %361
  %363 = vrot.lane.b32.xlu0 %v54, 6
  %v364 = vpop.permute.xlu0 %363
  %365 = vrot.lane.b32.xlu0 %v55, 6
  %v366 = vpop.permute.xlu0 %365
  %367 = vrot.lane.b32.xlu0 %v56, 6
  %v368 = vpop.permute.xlu0 %367
  %369 = vrot.lane.b32.xlu0 %v57, 6
  %v370 = vpop.permute.xlu0 %369
  %371 = vrot.lane.b32.xlu0 %v58, 6
  %v372 = vpop.permute.xlu0 %371
  %373 = vrot.lane.b32.xlu0 %v59, 6
  %v374 = vpop.permute.xlu0 %373
  %v383 = vmul.f32 %v336, %v360
  %v384 = vmul.f32 %v338, %v362
  %v385 = vmul.f32 %v340, %v364
  %v386 = vmul.f32 %v342, %v366
  %v387 = vmul.f32 %v344, %v368
  %v388 = vmul.f32 %v346, %v370
  %v389 = vmul.f32 %v348, %v372
  %v390 = vmul.f32 %v350, %v374
  %399 = vrot.lane.b32.xlu0 %v312, 6
  %v400 = vpop.permute.xlu0 %399
  %401 = vrot.lane.b32.xlu0 %v315, 6
  %v402 = vpop.permute.xlu0 %401
  %403 = vrot.lane.b32.xlu0 %v318, 6
  %v404 = vpop.permute.xlu0 %403
  %405 = vrot.lane.b32.xlu0 %v321, 6
  %v406 = vpop.permute.xlu0 %405
  %407 = vrot.lane.b32.xlu0 %v324, 6
  %v408 = vpop.permute.xlu0 %407
  %409 = vrot.lane.b32.xlu0 %v327, 6
  %v410 = vpop.permute.xlu0 %409
  %411 = vrot.lane.b32.xlu0 %v330, 6
  %v412 = vpop.permute.xlu0 %411
  %413 = vrot.lane.b32.xlu0 %v333, 6
  %v414 = vpop.permute.xlu0 %413
  %v423 = vadd.f32 %v383, %v400
  %v424 = vadd.f32 %v384, %v402
  %v425 = vadd.f32 %v385, %v404
  %v426 = vadd.f32 %v386, %v406
  %v427 = vadd.f32 %v387, %v408
  %v428 = vadd.f32 %v388, %v410
  %v429 = vadd.f32 %v389, %v412
  %v430 = vadd.f32 %v390, %v414
  %v431 = vsub.f32 -5.5136313, %v312
  %v432 = vsub.f32 -5.5136313, %v315
  %v433 = vsub.f32 -5.5136313, %v318
  %v434 = vsub.f32 -5.5136313, %v321
  %v435 = vsub.f32 -5.5136313, %v324
  %v436 = vsub.f32 -5.5136313, %v327
  %v437 = vsub.f32 -5.5136313, %v330
  %v438 = vsub.f32 -5.5136313, %v333
  %v439 = vsub.f32 %v431, %v93
  %v440 = vsub.f32 %v432, %v94
  %v441 = vsub.f32 %v433, %v95
  %v442 = vsub.f32 %v434, %v96
  %v443 = vsub.f32 %v435, %v97
  %v444 = vsub.f32 %v436, %v98
  %v445 = vsub.f32 %v437, %v99
  %v446 = vsub.f32 %v438, %v100
  %v447 = vld [vmem:[%s11] sm:$0x3f]
  %v448 = vld [vmem:[%s12] sm:$0x1]
  %v450 = vperm.slane %v448, 0
  %460 = vrot.lane.b32.xlu0 %v423, 122
  %v461 = vpop.permute.xlu0 %460
  %462 = vrot.lane.b32.xlu0 %v424, 122
  %v463 = vpop.permute.xlu0 %462
  %464 = vrot.lane.b32.xlu0 %v425, 122
  %v465 = vpop.permute.xlu0 %464
  %466 = vrot.lane.b32.xlu0 %v426, 122
  %v467 = vpop.permute.xlu0 %466
  %468 = vrot.lane.b32.xlu0 %v427, 122
  %v469 = vpop.permute.xlu0 %468
  %470 = vrot.lane.b32.xlu0 %v428, 122
  %v471 = vpop.permute.xlu0 %470
  %472 = vrot.lane.b32.xlu0 %v429, 122
  %v473 = vpop.permute.xlu0 %472
  %474 = vrot.lane.b32.xlu0 %v430, 122
  %v475 = vpop.permute.xlu0 %474
  %v476 = vsel %vm68, %v461, 0
  %v478 = vsel %vm68, %v463, 0
  %v480 = vsel %vm68, %v465, 0
  %v482 = vsel %vm68, %v467, 0
  %v484 = vsel %vm68, %v469, 0
  %v486 = vsel %vm68, %v471, 0
  %v488 = vsel %vm68, %v473, 0
  %v490 = vsel %vm68, %v475, 0
  %vm492 = vcmask 1045504
  %v494 = vsel %vm492, %v447, 0
  %496 = vmatpush.msra.mxu0 0.0
  %497 = vmatpush.msra.mxu0 0.0
  %498 = vmatpush.msra.mxu0 0.0
  %499 = vmatpush.msra.mxu0 0.0
  %500 = vmatpush.msra.mxu0 0.0
  %501 = vmatpush.msra.mxu0 0.0
  %502 = vmatpush.msra.mxu0 0.0
  %503 = vmatpush.msra.mxu0 0.0
  %504 = vmatpush.msra.mxu0 0.0
  %505 = vmatpush.msra.mxu0 0.0
  %506 = vmatpush.msra.mxu0 0.0
  %507 = vmatpush.msra.mxu0 0.0
  %508 = vmatpush.msra.mxu0 0.0
  %509 = vmatpush.msra.mxu0 0.0
  %510 = vmatpush.msra.mxu0 0.0
  %511 = vmatpush.msra.mxu0 %v494
  %512 = vmatmul.f32.gmra.mxu0 %v476
  %v513 = vpop.f32.mrf.mxu0
  %v514 = vadd.f32 %v450, %v513
  %515 = vmatmul.f32.gmra.mxu0 %v478
  %v516 = vpop.f32.mrf.mxu0
  %v517 = vadd.f32 %v450, %v516
  %518 = vmatmul.f32.gmra.mxu0 %v480
  %v519 = vpop.f32.mrf.mxu0
  %v520 = vadd.f32 %v450, %v519
  %521 = vmatmul.f32.gmra.mxu0 %v482
  %v522 = vpop.f32.mrf.mxu0
  %v523 = vadd.f32 %v450, %v522
  %524 = vmatmul.f32.gmra.mxu0 %v484
  %v525 = vpop.f32.mrf.mxu0
  %v526 = vadd.f32 %v450, %v525
  %527 = vmatmul.f32.gmra.mxu0 %v486
  %v528 = vpop.f32.mrf.mxu0
  %v529 = vadd.f32 %v450, %v528
  %530 = vmatmul.f32.gmra.mxu0 %v488
  %v531 = vpop.f32.mrf.mxu0
  %v532 = vadd.f32 %v450, %v531
  %533 = vmatmul.f32.gmra.mxu0 %v490
  %v534 = vpop.f32.mrf.mxu0
  %v535 = vadd.f32 %v450, %v534
  %536 = vdwg.mxu0
  %v537 = vmul.f32 %v514, 1.442695
  %v538 = vpow.pop %v537
  %v539 = vmul.f32 %v517, 1.442695
  %v540 = vpow.pop %v539
  %v541 = vmul.f32 %v520, 1.442695
  %v542 = vpow.pop %v541
  %v543 = vmul.f32 %v523, 1.442695
  %v544 = vpow.pop %v543
  %v545 = vmul.f32 %v526, 1.442695
  %v546 = vpow.pop %v545
  %v547 = vmul.f32 %v529, 1.442695
  %v548 = vpow.pop %v547
  %v549 = vmul.f32 %v532, 1.442695
  %v550 = vpow.pop %v549
  %v551 = vmul.f32 %v535, 1.442695
  %v552 = vpow.pop %v551
  %v553 = vmul.f32 %v44, %v538
  %v554 = vmul.f32 %v45, %v540
  %v555 = vmul.f32 %v46, %v542
  %v556 = vmul.f32 %v47, %v544
  %v557 = vmul.f32 %v48, %v546
  %v558 = vmul.f32 %v49, %v548
  %v559 = vmul.f32 %v50, %v550
  %v560 = vmul.f32 %v51, %v552
  %569 = vrot.lane.b32.xlu0 %v514, 126
  %v570 = vpop.permute.xlu0 %569
  %571 = vrot.lane.b32.xlu0 %v517, 126
  %v572 = vpop.permute.xlu0 %571
  %573 = vrot.lane.b32.xlu0 %v520, 126
  %v574 = vpop.permute.xlu0 %573
  %575 = vrot.lane.b32.xlu0 %v523, 126
  %v576 = vpop.permute.xlu0 %575
  %577 = vrot.lane.b32.xlu0 %v526, 126
  %v578 = vpop.permute.xlu0 %577
  %579 = vrot.lane.b32.xlu0 %v529, 126
  %v580 = vpop.permute.xlu0 %579
  %581 = vrot.lane.b32.xlu0 %v532, 126
  %v582 = vpop.permute.xlu0 %581
  %583 = vrot.lane.b32.xlu0 %v535, 126
  %v584 = vpop.permute.xlu0 %583
  %v593 = vadd.f32 %v553, %v570
  %v594 = vadd.f32 %v554, %v572
  %v595 = vadd.f32 %v555, %v574
  %v596 = vadd.f32 %v556, %v576
  %v597 = vadd.f32 %v557, %v578
  %v598 = vadd.f32 %v558, %v580
  %v599 = vadd.f32 %v559, %v582
  %v600 = vadd.f32 %v560, %v584
  %v601 = vld [vmem:[%s4] sm:$0x3]
  %v602 = vld [vmem:[%s5] sm:$0x3f]
  %603 = vrot.lane.b32.xlu0 %v44, 126
  %v604 = vpop.permute.xlu0 %603
  %605 = vrot.lane.b32.xlu0 %v45, 126
  %v606 = vpop.permute.xlu0 %605
  %607 = vrot.lane.b32.xlu0 %v46, 126
  %v608 = vpop.permute.xlu0 %607
  %609 = vrot.lane.b32.xlu0 %v47, 126
  %v610 = vpop.permute.xlu0 %609
  %611 = vrot.lane.b32.xlu0 %v48, 126
  %v612 = vpop.permute.xlu0 %611
  %613 = vrot.lane.b32.xlu0 %v49, 126
  %v614 = vpop.permute.xlu0 %613
  %615 = vrot.lane.b32.xlu0 %v50, 126
  %v616 = vpop.permute.xlu0 %615
  %617 = vrot.lane.b32.xlu0 %v51, 126
  %v618 = vpop.permute.xlu0 %617
  %v619 = vsel %vm68, %v604, 0
  %v621 = vsel %vm68, %v606, 0
  %v623 = vsel %vm68, %v608, 0
  %v625 = vsel %vm68, %v610, 0
  %v627 = vsel %vm68, %v612, 0
  %v629 = vsel %vm68, %v614, 0
  %v631 = vsel %vm68, %v616, 0
  %v633 = vsel %vm68, %v618, 0
  %v636 = vsel %vm492, %v602, 0
  %638 = vmatpush.msra.mxu0 0.0
  %639 = vmatpush.msra.mxu0 0.0
  %640 = vmatpush.msra.mxu0 0.0
  %641 = vmatpush.msra.mxu0 0.0
  %642 = vmatpush.msra.mxu0 0.0
  %643 = vmatpush.msra.mxu0 0.0
  %644 = vmatpush.msra.mxu0 0.0
  %645 = vmatpush.msra.mxu0 0.0
  %646 = vmatpush.msra.mxu0 0.0
  %647 = vmatpush.msra.mxu0 0.0
  %648 = vmatpush.msra.mxu0 0.0
  %649 = vmatpush.msra.mxu0 0.0
  %650 = vmatpush.msra.mxu0 0.0
  %651 = vmatpush.msra.mxu0 0.0
  %652 = vmatpush.msra.mxu0 0.0
  %653 = vmatpush.msra.mxu0 %v636
  %654 = vmatmul.f32.gmra.mxu0 %v619
  %v655 = vpop.f32.mrf.mxu0
  %v656 = vadd.f32 0.0, %v655
  %657 = vmatmul.f32.gmra.mxu0 %v621
  %v658 = vpop.f32.mrf.mxu0
  %v659 = vadd.f32 0.0, %v658
  %660 = vmatmul.f32.gmra.mxu0 %v623
  %v661 = vpop.f32.mrf.mxu0
  %v662 = vadd.f32 0.0, %v661
  %663 = vmatmul.f32.gmra.mxu0 %v625
  %v664 = vpop.f32.mrf.mxu0
  %v665 = vadd.f32 0.0, %v664
  %666 = vmatmul.f32.gmra.mxu0 %v627
  %v667 = vpop.f32.mrf.mxu0
  %v668 = vadd.f32 0.0, %v667
  %669 = vmatmul.f32.gmra.mxu0 %v629
  %v670 = vpop.f32.mrf.mxu0
  %v671 = vadd.f32 0.0, %v670
  %672 = vmatmul.f32.gmra.mxu0 %v631
  %v673 = vpop.f32.mrf.mxu0
  %v674 = vadd.f32 0.0, %v673
  %675 = vmatmul.f32.gmra.mxu0 %v633
  %v676 = vpop.f32.mrf.mxu0
  %v677 = vadd.f32 0.0, %v676
  %678 = vdwg.mxu0
  %vm679 = vcmask 15360
  %v681 = vsel %vm679, %v593, 0
  %v684 = vsel %vm679, %v594, 0
  %v687 = vsel %vm679, %v595, 0
  %v690 = vsel %vm679, %v596, 0
  %v693 = vsel %vm679, %v597, 0
  %v696 = vsel %vm679, %v598, 0
  %v699 = vsel %vm679, %v599, 0
  %v702 = vsel %vm679, %v600, 0
  %vm704 = vcmask 1041408
  %v706 = vsel %vm704, %v601, 0
  %708 = vmatpush.msra.mxu0 0.0
  %709 = vmatpush.msra.mxu0 0.0
  %710 = vmatpush.msra.mxu0 0.0
  %711 = vmatpush.msra.mxu0 0.0
  %712 = vmatpush.msra.mxu0 0.0
  %713 = vmatpush.msra.mxu0 0.0
  %714 = vmatpush.msra.mxu0 0.0
  %715 = vmatpush.msra.mxu0 0.0
  %716 = vmatpush.msra.mxu0 0.0
  %717 = vmatpush.msra.mxu0 0.0
  %718 = vmatpush.msra.mxu0 0.0
  %719 = vmatpush.msra.mxu0 0.0
  %720 = vmatpush.msra.mxu0 0.0
  %721 = vmatpush.msra.mxu0 0.0
  %722 = vmatpush.msra.mxu0 0.0
  %723 = vmatpush.msra.mxu0 %v706
  %724 = vmatmul.f32.gmra.mxu0 %v681
  %v725 = vpop.f32.mrf.mxu0
  %v726 = vadd.f32 %v656, %v725
  %727 = vmatmul.f32.gmra.mxu0 %v684
  %v728 = vpop.f32.mrf.mxu0
  %v729 = vadd.f32 %v659, %v728
  %730 = vmatmul.f32.gmra.mxu0 %v687
  %v731 = vpop.f32.mrf.mxu0
  %v732 = vadd.f32 %v662, %v731
  %733 = vmatmul.f32.gmra.mxu0 %v690
  %v734 = vpop.f32.mrf.mxu0
  %v735 = vadd.f32 %v665, %v734
  %736 = vmatmul.f32.gmra.mxu0 %v693
  %v737 = vpop.f32.mrf.mxu0
  %v738 = vadd.f32 %v668, %v737
  %739 = vmatmul.f32.gmra.mxu0 %v696
  %v740 = vpop.f32.mrf.mxu0
  %v741 = vadd.f32 %v671, %v740
  %742 = vmatmul.f32.gmra.mxu0 %v699
  %v743 = vpop.f32.mrf.mxu0
  %v744 = vadd.f32 %v674, %v743
  %745 = vmatmul.f32.gmra.mxu0 %v702
  %v746 = vpop.f32.mrf.mxu0
  %v747 = vadd.f32 %v677, %v746
  %748 = vdwg.mxu0
  %v749 = vld [vmem:[%s6] sm:$0x1]
  %v751 = vperm.slane %v749, 0
  %v753 = vadd.f32 %v726, %v751
  %v754 = vadd.f32 %v729, %v751
  %v755 = vadd.f32 %v732, %v751
  %v756 = vadd.f32 %v735, %v751
  %v757 = vadd.f32 %v738, %v751
  %v758 = vadd.f32 %v741, %v751
  %v759 = vadd.f32 %v744, %v751
  %v760 = vadd.f32 %v747, %v751
  %v761 = vmax.f32 %v753, 0.0
  %v762 = vmax.f32 %v754, 0.0
  %v763 = vmax.f32 %v755, 0.0
  %v764 = vmax.f32 %v756, 0.0
  %v765 = vmax.f32 %v757, 0.0
  %v766 = vmax.f32 %v758, 0.0
  %v767 = vmax.f32 %v759, 0.0
  %v768 = vmax.f32 %v760, 0.0
  %s769 = scalar_lea.vmem %s7, 32
  %v770 = vld [vmem:[%s769] sm:$0xff]
  %v771 = vld [vmem:[%s769 + $0x8] sm:$0xff]
  %v772 = vld [vmem:[%s769 + $0x10] sm:$0xff]
  %v773 = vld [vmem:[%s769 + $0x18] sm:$0xff]
  %s774 = scalar_lea.vmem %s8, 1
  %v775 = vld [vmem:[%s774] sm:$0x1]
  %v777 = vperm.slane %v775, 0
  %v780 = vsel %vm188, %v761, 0
  %v783 = vsel %vm188, %v762, 0
  %v786 = vsel %vm188, %v763, 0
  %v789 = vsel %vm188, %v764, 0
  %v792 = vsel %vm188, %v765, 0
  %v795 = vsel %vm188, %v766, 0
  %v798 = vsel %vm188, %v767, 0
  %v801 = vsel %vm188, %v768, 0
  %803 = vmatpush.msra.mxu0 0.0
  %804 = vmatpush.msra.mxu0 0.0
  %805 = vmatpush.msra.mxu0 0.0
  %806 = vmatpush.msra.mxu0 0.0
  %807 = vmatpush.msra.mxu0 0.0
  %808 = vmatpush.msra.mxu0 0.0
  %809 = vmatpush.msra.mxu0 0.0
  %810 = vmatpush.msra.mxu0 0.0
  %811 = vmatpush.msra.mxu0 0.0
  %812 = vmatpush.msra.mxu0 0.0
  %813 = vmatpush.msra.mxu0 0.0
  %814 = vmatpush.msra.mxu0 0.0
  %815 = vmatpush.msra.mxu0 %v773
  %816 = vmatpush.msra.mxu0 %v772
  %817 = vmatpush.msra.mxu0 %v771
  %818 = vmatpush.msra.mxu0 %v770
  %819 = vmatmul.f32.gmra.mxu0 %v780
  %v820 = vpop.f32.mrf.mxu0
  %v821 = vadd.f32 %v777, %v820
  %822 = vmatmul.f32.gmra.mxu0 %v783
  %v823 = vpop.f32.mrf.mxu0
  %v824 = vadd.f32 %v777, %v823
  %825 = vmatmul.f32.gmra.mxu0 %v786
  %v826 = vpop.f32.mrf.mxu0
  %v827 = vadd.f32 %v777, %v826
  %828 = vmatmul.f32.gmra.mxu0 %v789
  %v829 = vpop.f32.mrf.mxu0
  %v830 = vadd.f32 %v777, %v829
  %831 = vmatmul.f32.gmra.mxu0 %v792
  %v832 = vpop.f32.mrf.mxu0
  %v833 = vadd.f32 %v777, %v832
  %834 = vmatmul.f32.gmra.mxu0 %v795
  %v835 = vpop.f32.mrf.mxu0
  %v836 = vadd.f32 %v777, %v835
  %837 = vmatmul.f32.gmra.mxu0 %v798
  %v838 = vpop.f32.mrf.mxu0
  %v839 = vadd.f32 %v777, %v838
  %840 = vmatmul.f32.gmra.mxu0 %v801
  %v841 = vpop.f32.mrf.mxu0
  %v842 = vadd.f32 %v777, %v841
  %843 = vdwg.mxu0
  %v844 = vmax.f32 %v821, 0.0
  %v845 = vmax.f32 %v824, 0.0
  %v846 = vmax.f32 %v827, 0.0
  %v847 = vmax.f32 %v830, 0.0
  %v848 = vmax.f32 %v833, 0.0
  %v849 = vmax.f32 %v836, 0.0
  %v850 = vmax.f32 %v839, 0.0
  %v851 = vmax.f32 %v842, 0.0
  %s852 = scalar_lea.vmem %s9, 32
  %v853 = vld [vmem:[%s852] sm:$0xff]
  %v854 = vld [vmem:[%s852 + $0x8] sm:$0xff]
  %v855 = vld [vmem:[%s852 + $0x10] sm:$0xff]
  %v856 = vld [vmem:[%s852 + $0x18] sm:$0xff]
  %s857 = scalar_lea.vmem %s10, 1
  %v858 = vld [vmem:[%s857] sm:$0x1]
  %v860 = vperm.slane %v858, 0
  %v863 = vsel %vm188, %v844, 0
  %v866 = vsel %vm188, %v845, 0
  %v869 = vsel %vm188, %v846, 0
  %v872 = vsel %vm188, %v847, 0
  %v875 = vsel %vm188, %v848, 0
  %v878 = vsel %vm188, %v849, 0
  %v881 = vsel %vm188, %v850, 0
  %v884 = vsel %vm188, %v851, 0
  %886 = vmatpush.msra.mxu0 0.0
  %887 = vmatpush.msra.mxu0 0.0
  %888 = vmatpush.msra.mxu0 0.0
  %889 = vmatpush.msra.mxu0 0.0
  %890 = vmatpush.msra.mxu0 0.0
  %891 = vmatpush.msra.mxu0 0.0
  %892 = vmatpush.msra.mxu0 0.0
  %893 = vmatpush.msra.mxu0 0.0
  %894 = vmatpush.msra.mxu0 0.0
  %895 = vmatpush.msra.mxu0 0.0
  %896 = vmatpush.msra.mxu0 0.0
  %897 = vmatpush.msra.mxu0 0.0
  %898 = vmatpush.msra.mxu0 %v856
  %899 = vmatpush.msra.mxu0 %v855
  %900 = vmatpush.msra.mxu0 %v854
  %901 = vmatpush.msra.mxu0 %v853
  %902 = vmatmul.f32.gmra.mxu0 %v863
  %v903 = vpop.f32.mrf.mxu0
  %v904 = vadd.f32 %v860, %v903
  %905 = vmatmul.f32.gmra.mxu0 %v866
  %v906 = vpop.f32.mrf.mxu0
  %v907 = vadd.f32 %v860, %v906
  %908 = vmatmul.f32.gmra.mxu0 %v869
  %v909 = vpop.f32.mrf.mxu0
  %v910 = vadd.f32 %v860, %v909
  %911 = vmatmul.f32.gmra.mxu0 %v872
  %v912 = vpop.f32.mrf.mxu0
  %v913 = vadd.f32 %v860, %v912
  %914 = vmatmul.f32.gmra.mxu0 %v875
  %v915 = vpop.f32.mrf.mxu0
  %v916 = vadd.f32 %v860, %v915
  %917 = vmatmul.f32.gmra.mxu0 %v878
  %v918 = vpop.f32.mrf.mxu0
  %v919 = vadd.f32 %v860, %v918
  %920 = vmatmul.f32.gmra.mxu0 %v881
  %v921 = vpop.f32.mrf.mxu0
  %v922 = vadd.f32 %v860, %v921
  %923 = vmatmul.f32.gmra.mxu0 %v884
  %v924 = vpop.f32.mrf.mxu0
  %v925 = vadd.f32 %v860, %v924
  %926 = vdwg.mxu0
  %935 = vrot.lane.b32.xlu0 %v904, 6
  %v936 = vpop.permute.xlu0 %935
  %937 = vrot.lane.b32.xlu0 %v907, 6
  %v938 = vpop.permute.xlu0 %937
  %939 = vrot.lane.b32.xlu0 %v910, 6
  %v940 = vpop.permute.xlu0 %939
  %941 = vrot.lane.b32.xlu0 %v913, 6
  %v942 = vpop.permute.xlu0 %941
  %943 = vrot.lane.b32.xlu0 %v916, 6
  %v944 = vpop.permute.xlu0 %943
  %945 = vrot.lane.b32.xlu0 %v919, 6
  %v946 = vpop.permute.xlu0 %945
  %947 = vrot.lane.b32.xlu0 %v922, 6
  %v948 = vpop.permute.xlu0 %947
  %949 = vrot.lane.b32.xlu0 %v925, 6
  %v950 = vpop.permute.xlu0 %949
  %v959 = vsub.f32 %v423, %v936
  %v960 = vsub.f32 %v424, %v938
  %v961 = vsub.f32 %v425, %v940
  %v962 = vsub.f32 %v426, %v942
  %v963 = vsub.f32 %v427, %v944
  %v964 = vsub.f32 %v428, %v946
  %v965 = vsub.f32 %v429, %v948
  %v966 = vsub.f32 %v430, %v950
  %v967 = vsub.f32 -5.5136313, %v904
  %v968 = vsub.f32 -5.5136313, %v907
  %v969 = vsub.f32 -5.5136313, %v910
  %v970 = vsub.f32 -5.5136313, %v913
  %v971 = vsub.f32 -5.5136313, %v916
  %v972 = vsub.f32 -5.5136313, %v919
  %v973 = vsub.f32 -5.5136313, %v922
  %v974 = vsub.f32 -5.5136313, %v925
  %v975 = vmul.f32 %v959, %v959
  %v976 = vmul.f32 %v960, %v960
  %v977 = vmul.f32 %v961, %v961
  %v978 = vmul.f32 %v962, %v962
  %v979 = vmul.f32 %v963, %v963
  %v980 = vmul.f32 %v964, %v964
  %v981 = vmul.f32 %v965, %v965
  %v982 = vmul.f32 %v966, %v966
  %v983 = vmul.f32 %v904, 1.442695
  %v984 = vpow.pop %v983
  %v985 = vmul.f32 %v907, 1.442695
  %v986 = vpow.pop %v985
  %v987 = vmul.f32 %v910, 1.442695
  %v988 = vpow.pop %v987
  %v989 = vmul.f32 %v913, 1.442695
  %v990 = vpow.pop %v989
  %v991 = vmul.f32 %v916, 1.442695
  %v992 = vpow.pop %v991
  %v993 = vmul.f32 %v919, 1.442695
  %v994 = vpow.pop %v993
  %v995 = vmul.f32 %v922, 1.442695
  %v996 = vpow.pop %v995
  %v997 = vmul.f32 %v925, 1.442695
  %v998 = vpow.pop %v997
  %v999 = vmul.f32 %v975, %v984
  %v1000 = vmul.f32 %v976, %v986
  %v1001 = vmul.f32 %v977, %v988
  %v1002 = vmul.f32 %v978, %v990
  %v1003 = vmul.f32 %v979, %v992
  %v1004 = vmul.f32 %v980, %v994
  %v1005 = vmul.f32 %v981, %v996
  %v1006 = vmul.f32 %v982, %v998
  %1015 = vrot.lane.b32.xlu0 %v999, 122
  %v1016 = vpop.permute.xlu0 %1015
  %1017 = vrot.lane.b32.xlu0 %v1000, 122
  %v1018 = vpop.permute.xlu0 %1017
  %1019 = vrot.lane.b32.xlu0 %v1001, 122
  %v1020 = vpop.permute.xlu0 %1019
  %1021 = vrot.lane.b32.xlu0 %v1002, 122
  %v1022 = vpop.permute.xlu0 %1021
  %1023 = vrot.lane.b32.xlu0 %v1003, 122
  %v1024 = vpop.permute.xlu0 %1023
  %1025 = vrot.lane.b32.xlu0 %v1004, 122
  %v1026 = vpop.permute.xlu0 %1025
  %1027 = vrot.lane.b32.xlu0 %v1005, 122
  %v1028 = vpop.permute.xlu0 %1027
  %1029 = vrot.lane.b32.xlu0 %v1006, 122
  %v1030 = vpop.permute.xlu0 %1029
  %v1039 = vsel %vm68, %v1016, 0.0
  %1040 = vadd.xlane.f32.xlu0 %v1039
  %v1041 = vpop.xlane.xlu0 %1040
  %v1042 = vsel %vm68, %v1018, 0.0
  %1043 = vadd.xlane.f32.xlu0 %v1042
  %v1044 = vpop.xlane.xlu0 %1043
  %v1045 = vsel %vm68, %v1020, 0.0
  %1046 = vadd.xlane.f32.xlu0 %v1045
  %v1047 = vpop.xlane.xlu0 %1046
  %v1048 = vsel %vm68, %v1022, 0.0
  %1049 = vadd.xlane.f32.xlu0 %v1048
  %v1050 = vpop.xlane.xlu0 %1049
  %v1051 = vsel %vm68, %v1024, 0.0
  %1052 = vadd.xlane.f32.xlu0 %v1051
  %v1053 = vpop.xlane.xlu0 %1052
  %v1054 = vsel %vm68, %v1026, 0.0
  %1055 = vadd.xlane.f32.xlu0 %v1054
  %v1056 = vpop.xlane.xlu0 %1055
  %v1057 = vsel %vm68, %v1028, 0.0
  %1058 = vadd.xlane.f32.xlu0 %v1057
  %v1059 = vpop.xlane.xlu0 %1058
  %v1060 = vsel %vm68, %v1030, 0.0
  %1061 = vadd.xlane.f32.xlu0 %v1060
  %v1062 = vpop.xlane.xlu0 %1061
  %v1063 = vmul.f32 %v1041, 0.5
  %v1064 = vmul.f32 %v1044, 0.5
  %v1065 = vmul.f32 %v1047, 0.5
  %v1066 = vmul.f32 %v1050, 0.5
  %v1067 = vmul.f32 %v1053, 0.5
  %v1068 = vmul.f32 %v1056, 0.5
  %v1069 = vmul.f32 %v1059, 0.5
  %v1070 = vmul.f32 %v1062, 0.5
  %v1071 = vsub.f32 %v967, %v1063
  %v1072 = vsub.f32 %v968, %v1064
  %v1073 = vsub.f32 %v969, %v1065
  %v1074 = vsub.f32 %v970, %v1066
  %v1075 = vsub.f32 %v971, %v1067
  %v1076 = vsub.f32 %v972, %v1068
  %v1077 = vsub.f32 %v973, %v1069
  %v1078 = vsub.f32 %v974, %v1070
  %1087 = vrot.lane.b32.xlu0 %v1071, 120
  %v1088 = vpop.permute.xlu0 %1087
  %1089 = vrot.lane.b32.xlu0 %v1072, 120
  %v1090 = vpop.permute.xlu0 %1089
  %1091 = vrot.lane.b32.xlu0 %v1073, 120
  %v1092 = vpop.permute.xlu0 %1091
  %1093 = vrot.lane.b32.xlu0 %v1074, 120
  %v1094 = vpop.permute.xlu0 %1093
  %1095 = vrot.lane.b32.xlu0 %v1075, 120
  %v1096 = vpop.permute.xlu0 %1095
  %1097 = vrot.lane.b32.xlu0 %v1076, 120
  %v1098 = vpop.permute.xlu0 %1097
  %1099 = vrot.lane.b32.xlu0 %v1077, 120
  %v1100 = vpop.permute.xlu0 %1099
  %1101 = vrot.lane.b32.xlu0 %v1078, 120
  %v1102 = vpop.permute.xlu0 %1101
  %v1111 = vadd.f32 %v514, %v1088
  %v1112 = vadd.f32 %v517, %v1090
  %v1113 = vadd.f32 %v520, %v1092
  %v1114 = vadd.f32 %v523, %v1094
  %v1115 = vadd.f32 %v526, %v1096
  %v1116 = vadd.f32 %v529, %v1098
  %v1117 = vadd.f32 %v532, %v1100
  %v1118 = vadd.f32 %v535, %v1102
  %1127 = vrot.lane.b32.xlu0 %v439, 120
  %v1128 = vpop.permute.xlu0 %1127
  %1129 = vrot.lane.b32.xlu0 %v440, 120
  %v1130 = vpop.permute.xlu0 %1129
  %1131 = vrot.lane.b32.xlu0 %v441, 120
  %v1132 = vpop.permute.xlu0 %1131
  %1133 = vrot.lane.b32.xlu0 %v442, 120
  %v1134 = vpop.permute.xlu0 %1133
  %1135 = vrot.lane.b32.xlu0 %v443, 120
  %v1136 = vpop.permute.xlu0 %1135
  %1137 = vrot.lane.b32.xlu0 %v444, 120
  %v1138 = vpop.permute.xlu0 %1137
  %1139 = vrot.lane.b32.xlu0 %v445, 120
  %v1140 = vpop.permute.xlu0 %1139
  %1141 = vrot.lane.b32.xlu0 %v446, 120
  %v1142 = vpop.permute.xlu0 %1141
  %v1151 = vsub.f32 %v1111, %v1128
  %v1152 = vsub.f32 %v1112, %v1130
  %v1153 = vsub.f32 %v1113, %v1132
  %v1154 = vsub.f32 %v1114, %v1134
  %v1155 = vsub.f32 %v1115, %v1136
  %v1156 = vsub.f32 %v1116, %v1138
  %v1157 = vsub.f32 %v1117, %v1140
  %v1158 = vsub.f32 %v1118, %v1142
  %1167 = vrot.lane.b32.xlu0 %v1151, 126
  %v1168 = vpop.permute.xlu0 %1167
  %1169 = vrot.lane.b32.xlu0 %v1152, 126
  %v1170 = vpop.permute.xlu0 %1169
  %1171 = vrot.lane.b32.xlu0 %v1153, 126
  %v1172 = vpop.permute.xlu0 %1171
  %1173 = vrot.lane.b32.xlu0 %v1154, 126
  %v1174 = vpop.permute.xlu0 %1173
  %1175 = vrot.lane.b32.xlu0 %v1155, 126
  %v1176 = vpop.permute.xlu0 %1175
  %1177 = vrot.lane.b32.xlu0 %v1156, 126
  %v1178 = vpop.permute.xlu0 %1177
  %1179 = vrot.lane.b32.xlu0 %v1157, 126
  %v1180 = vpop.permute.xlu0 %1179
  %1181 = vrot.lane.b32.xlu0 %v1158, 126
  %v1182 = vpop.permute.xlu0 %1181
  %v1191 = vsel %vm679, %v593, %v1168
  %v1192 = vsel %vm679, %v594, %v1170
  %v1193 = vsel %vm679, %v595, %v1172
  %v1194 = vsel %vm679, %v596, %v1174
  %v1195 = vsel %vm679, %v597, %v1176
  %v1196 = vsel %vm679, %v598, %v1178
  %v1197 = vsel %vm679, %v599, %v1180
  %v1198 = vsel %vm679, %v600, %v1182
  %vm1199 = vcmask 23552
  %v1200 = vsel %vm1199, %v1191, 0.0
  %v1201 = vsel %vm1199, %v1192, 0.0
  %v1202 = vsel %vm1199, %v1193, 0.0
  %v1203 = vsel %vm1199, %v1194, 0.0
  %v1204 = vsel %vm1199, %v1195, 0.0
  %v1205 = vsel %vm1199, %v1196, 0.0
  %v1206 = vsel %vm1199, %v1197, 0.0
  %v1207 = vsel %vm1199, %v1198, 0.0
  %1208 = vst.msk [vmem:[%s13] sm:$0xff] %vm106, %v1200
  %1209 = vst.msk [vmem:[%s13 + $0x8] sm:$0xff] %vm106, %v1201
  %1210 = vst.msk [vmem:[%s13 + $0x10] sm:$0xff] %vm106, %v1202
  %1211 = vst.msk [vmem:[%s13 + $0x18] sm:$0xff] %vm106, %v1203
  %1212 = vst.msk [vmem:[%s13 + $0x20] sm:$0xff] %vm106, %v1204
  %1213 = vst.msk [vmem:[%s13 + $0x28] sm:$0xff] %vm106, %v1205
  %1214 = vst.msk [vmem:[%s13 + $0x30] sm:$0xff] %vm106, %v1206
  %1215 = vst.msk [vmem:[%s13 + $0x38] sm:$0xff] %vm106, %v1207
  // Predicated region
  $region54: #{cif_step_forward.1} parent=0 // pred_check
    _
  $region55: #{cif_step_forward.1} parent=0 // pred_check_branch
    %1217 = sbr.rel (0) target = $region57
  $region56: #{cif_step_forward.1} parent=0 // pred_region
    _
  $region57: #{cif_step_forward.1} parent=0 // pred_fallthru
    _
  // Predicated region
  $region58: #{cif_step_forward.1} parent=0 // pred_check
    _
  $region59: #{cif_step_forward.1} parent=0 // pred_check_branch
    %1219 = sbr.rel (0) target = $region61
  $region60: #{cif_step_forward.1} parent=0 // pred_region
    _
  $region61: #{cif_step_forward.1} parent=0 // pred_fallthru
    _

</llo_original>
